<compile_context>
chip_gen: v6e
topology: v6e:2x2x1
jax: 0.10.0
libtpu: 0.0.40
codegen_flags: <defaults>
</compile_context>

<pallas_src>
import math

import jax
import jax.numpy as jnp
from jax.experimental import pallas as pl
from jax.experimental.pallas import tpu as pltpu


def aug_mlp_kernel(x_ref, w1_ref, b1_ref, w2_ref, o_ref):
    # x_ref:  (tm, Hp)  bf16
    # w1_ref: (Hp, Dp)  bf16     b1_ref: (1, Dp) f32
    # w2_ref: (Dp, Hp)  bf16
    # o_ref:  (tm, Hp)  f32
    h = jnp.dot(x_ref[...], w1_ref[...], preferred_element_type=jnp.float32)
    h = h + b1_ref[...]                       # broadcast (1, Dp) over rows, f32
    h = jax.nn.gelu(h, approximate=True)      # tanh GELU -> EUP slot
    y = jnp.dot(h.astype(w2_ref.dtype), w2_ref[...],
                preferred_element_type=jnp.float32)
    o_ref[...] = y.astype(o_ref.dtype)        # lane-dense (128-wide) store


def _round_up(a, b):
    return (a + b - 1) // b * b


def aug_mlp(x, w1, b1, w2, *, tm=512):
    """x: (B, S, H) float32; w1: (H, D); b1: (D,); w2: (D, H). Returns (B, S, H)."""
    B, S, H = x.shape
    Hin, D = w1.shape
    assert Hin == H and w2.shape == (D, H) and b1.shape == (D,)
    M = B * S

    LANE, SUBLANE = 128, 8
    Hp = _round_up(H, LANE)
    Dp = _round_up(D, LANE)

    # Row tile: whole problem in one step when small, else 512-row tiles.
    tm = min(tm, _round_up(M, SUBLANE))
    Mp = _round_up(M, tm)

    # Layout plumbing in the wrapper: pad to lane width, cast matmul operands
    # to bf16 (halves x/W DMA bytes, native MXU dtype). Bias stays f32.
    x2 = jnp.pad(x.reshape(M, H).astype(jnp.bfloat16),
                 ((0, Mp - M), (0, Hp - H)))
    w1p = jnp.pad(w1.astype(jnp.bfloat16), ((0, Hp - H), (0, Dp - D)))
    b1p = jnp.pad(b1.reshape(1, D).astype(jnp.float32), ((0, 0), (0, Dp - D)))
    w2p = jnp.pad(w2.astype(jnp.bfloat16), ((0, Dp - D), (0, Hp - H)))

    out = pl.pallas_call(
        aug_mlp_kernel,
        out_shape=jax.ShapeDtypeStruct((Mp, Hp), x.dtype),
        grid=(Mp // tm,),
        in_specs=[
            pl.BlockSpec((tm, Hp), lambda i: (i, 0)),   # x row tile
            pl.BlockSpec((Hp, Dp), lambda i: (0, 0)),   # W1 (resident)
            pl.BlockSpec((1, Dp), lambda i: (0, 0)),    # b1 (resident)
            pl.BlockSpec((Dp, Hp), lambda i: (0, 0)),   # W2 (resident)
        ],
        out_specs=pl.BlockSpec((tm, Hp), lambda i: (i, 0)),
        compiler_params=pltpu.CompilerParams(
            dimension_semantics=("parallel",)),         # shard rows across TCs (v7x)
    )(x2, w1p, b1p, w2p)

    return out[:M, :H].reshape(B, S, H)


def reference(x, w1, b1, w2):
    # f32 reference with exact (erf) GELU, matching torch's default.
    h = jnp.einsum("bsh,hd->bsd", x, w1) + b1
    h = 0.5 * h * (1.0 + jax.lax.erf(h / math.sqrt(2.0)))
    return jnp.einsum("bsd,dh->bsh", h, w2)


if __name__ == "__main__":
    # config: hidden_size=32, aug_dim=32, line_m=2 -> line_dim=64, hidden_act="gelu"
    B, S, H = 2, 8, 32
    AUG_DIM, LINE_M = 32, 2
    D = LINE_M * AUG_DIM  # line_dim

    key = jax.random.PRNGKey(0)
    kx, kw1, kb1, kw2 = jax.random.split(key, 4)

    x = jax.random.normal(kx, (B, S, H), dtype=jnp.float32)
    # deterministic "init": uniform(-1/sqrt(fan_in), 1/sqrt(fan_in)) like nn.Linear
    w1 = jax.random.uniform(kw1, (H, D), jnp.float32,
                            -1.0 / math.sqrt(H), 1.0 / math.sqrt(H))
    b1 = jax.random.uniform(kb1, (D,), jnp.float32,
                            -1.0 / math.sqrt(H), 1.0 / math.sqrt(H))
    w2 = jax.random.uniform(kw2, (D, H), jnp.float32,
                            -1.0 / math.sqrt(D), 1.0 / math.sqrt(D))

    y = aug_mlp(x, w1, b1, w2)
    jax.block_until_ready(y)

    y_ref = reference(x, w1, b1, w2)
    assert y.shape == (B, S, H)
    # bf16 matmul operands + tanh-approx GELU => loosen tolerance vs f32/erf ref.
    assert jnp.allclose(y, y_ref, atol=3e-2, rtol=3e-2), "mismatch vs reference"

    print("KERNEL_OK")
</pallas_src>

<mosaic_0001>
module attributes {stable_mosaic.version = 11 : i64} {
  func.func @aug_mlp_kernel(%arg0: i32, %arg1: memref<16x128xbf16, #tpu.memory_space<vmem>>, %arg2: memref<128x128xbf16, #tpu.memory_space<vmem>>, %arg3: memref<1x128xf32, #tpu.memory_space<vmem>>, %arg4: memref<128x128xbf16, #tpu.memory_space<vmem>>, %arg5: memref<16x128xf32, #tpu.memory_space<vmem>>) attributes {dimension_semantics = [#tpu.dimension_semantics<parallel>], iteration_bounds = array<i64: 1>, scalar_prefetch = 0 : i64, scratch_operands = 0 : i64, tpu.core_type = #tpu.core_type<tc>, window_params = [{transform_indices = @transform_0, window_bounds = array<i64: 16, 128>}, {pipeline_mode = #tpu.pipeline_mode<synchronous>, transform_indices = @transform_1, window_bounds = array<i64: 128, 128>}, {pipeline_mode = #tpu.pipeline_mode<synchronous>, transform_indices = @transform_2, window_bounds = array<i64: 1, 128>}, {pipeline_mode = #tpu.pipeline_mode<synchronous>, transform_indices = @transform_3, window_bounds = array<i64: 128, 128>}, {transform_indices = @transform_4, window_bounds = array<i64: 16, 128>}]} {
    %c0 = arith.constant 0 : index
    %c0_0 = arith.constant 0 : index
    %0 = vector.load %arg1[%c0, %c0_0] : memref<16x128xbf16, #tpu.memory_space<vmem>>, vector<16x128xbf16>
    %c0_1 = arith.constant 0 : index
    %c0_2 = arith.constant 0 : index
    %1 = vector.load %arg2[%c0_1, %c0_2] : memref<128x128xbf16, #tpu.memory_space<vmem>>, vector<128x128xbf16>
    %cst = arith.constant dense<0.000000e+00> : vector<16x128xf32>
    %2 = tpu.matmul %0, %1, %cst {dimension_numbers = #tpu.dot_dimension_numbers<[1], [0], [0], [1], [0, 0, 1, 1], [], []>} : vector<16x128xbf16>, vector<128x128xbf16>, vector<16x128xf32> -> vector<16x128xf32>
    %c0_3 = arith.constant 0 : index
    %c0_4 = arith.constant 0 : index
    %3 = vector.load %arg3[%c0_3, %c0_4] : memref<1x128xf32, #tpu.memory_space<vmem>>, vector<1x128xf32>
    %4 = vector.broadcast %3 : vector<1x128xf32> to vector<16x128xf32>
    %5 = arith.addf %2, %4 : vector<16x128xf32>
    %6 = arith.mulf %5, %5 : vector<16x128xf32>
    %7 = arith.mulf %5, %6 : vector<16x128xf32>
    %cst_5 = arith.constant 4.471500e-02 : f32
    %8 = vector.broadcast %cst_5 : f32 to vector<16x128xf32>
    %9 = arith.mulf %8, %7 : vector<16x128xf32>
    %10 = arith.addf %5, %9 : vector<16x128xf32>
    %cst_6 = arith.constant 0.797884583 : f32
    %11 = vector.broadcast %cst_6 : f32 to vector<16x128xf32>
    %12 = arith.mulf %11, %10 : vector<16x128xf32>
    %13 = math.tanh %12 : vector<16x128xf32>
    %cst_7 = arith.constant 1.000000e+00 : f32
    %14 = vector.broadcast %cst_7 : f32 to vector<16x128xf32>
    %15 = arith.addf %14, %13 : vector<16x128xf32>
    %cst_8 = arith.constant 5.000000e-01 : f32
    %16 = vector.broadcast %cst_8 : f32 to vector<16x128xf32>
    %17 = arith.mulf %16, %15 : vector<16x128xf32>
    %18 = arith.mulf %5, %17 : vector<16x128xf32>
    %19 = arith.truncf %18 : vector<16x128xf32> to vector<16x128xbf16>
    %c0_9 = arith.constant 0 : index
    %c0_10 = arith.constant 0 : index
    %20 = vector.load %arg4[%c0_9, %c0_10] : memref<128x128xbf16, #tpu.memory_space<vmem>>, vector<128x128xbf16>
    %cst_11 = arith.constant dense<0.000000e+00> : vector<16x128xf32>
    %21 = tpu.matmul %19, %20, %cst_11 {dimension_numbers = #tpu.dot_dimension_numbers<[1], [0], [0], [1], [0, 0, 1, 1], [], []>} : vector<16x128xbf16>, vector<128x128xbf16>, vector<16x128xf32> -> vector<16x128xf32>
    %c0_12 = arith.constant 0 : index
    %c0_13 = arith.constant 0 : index
    %22 = vector.load %arg5[%c0_12, %c0_13] : memref<16x128xf32, #tpu.memory_space<vmem>>, vector<16x128xf32>
    tpu.vector_store %arg5[%c0_12, %c0_13], %21 {strides = array<i32>} : memref<16x128xf32, #tpu.memory_space<vmem>>, vector<16x128xf32>,
    return
  }
  func.func @transform_0(%arg0: i32) -> (i32, i32) {
    %c0_i32 = arith.constant 0 : i32
    %c0_i32_0 = arith.constant 0 : i32
    return %arg0, %c0_i32 : i32, i32
  }
  func.func @transform_1(%arg0: i32) -> (i32, i32) {
    %c0_i32 = arith.constant 0 : i32
    %c0_i32_0 = arith.constant 0 : i32
    %c0_i32_1 = arith.constant 0 : i32
    return %c0_i32, %c0_i32_0 : i32, i32
  }
  func.func @transform_2(%arg0: i32) -> (i32, i32) {
    %c0_i32 = arith.constant 0 : i32
    %c0_i32_0 = arith.constant 0 : i32
    %c0_i32_1 = arith.constant 0 : i32
    return %c0_i32, %c0_i32_0 : i32, i32
  }
  func.func @transform_3(%arg0: i32) -> (i32, i32) {
    %c0_i32 = arith.constant 0 : i32
    %c0_i32_0 = arith.constant 0 : i32
    %c0_i32_1 = arith.constant 0 : i32
    return %c0_i32, %c0_i32_0 : i32, i32
  }
  func.func @transform_4(%arg0: i32) -> (i32, i32) {
    %c0_i32 = arith.constant 0 : i32
    %c0_i32_0 = arith.constant 0 : i32
    return %arg0, %c0_i32 : i32, i32
  }
}

</mosaic_0001>

<llo_original>
// kernel: tpu_custom_call.1
$region0: #{tpu_custom_call.1}
  #allocation0 [shape = 'u32[]', space=smem, size = 0x4, offset = 0x4, fixed_abs, tag = 'smem constant byte address 0x4 - core index']
  #allocation1 [shape = 'u32[144,128]{1,0:T(1,128)}', space=vmem, size = 0x12000, scoped, tag = 'internal scratch']
  %s0 = inlined_call_operand.hbm [shape: bf16[16,128], index: 0, kind: input, shape index: {}]
  %s1 = inlined_call_operand.hbm [shape: bf16[128,128], index: 1, kind: input, shape index: {}]
  %s2 = inlined_call_operand.vmem [shape: f32[1,128], index: 2, kind: input, shape index: {}]
  %s3 = inlined_call_operand.hbm [shape: bf16[128,128], index: 3, kind: input, shape index: {}]
  %s4 = inlined_call_operand.hbm [shape: f32[16,128], index: 4, kind: output, shape index: {}]
  %s5 = sld [smem:[#allocation0]]
  $region38: #{tpu_custom_call.1} parent=0
    _
  %s7 = ssub.s32 1, %s5
  %s8 = scalar_select 0, %s7, %s5
  $region1: #{tpu_custom_call.1} parent=0
    #allocation2 [shape = 'u8[4096]{0}', space=vmem, size = 0x1000, scoped, tag = 'input window, operand 0, single buffered']
    #allocation3 [shape = 's32[1]{0}', space=sflag, size = 0x4, scoped, tag = 'scoped memory for tpu_custom_call.1']
    #allocation4 [shape = 's32[1]{0}', space=sflag, size = 0x4, scoped, tag = 'scoped memory for tpu_custom_call.1']
    #allocation5 [shape = 'u8[32768]{0}', space=vmem, size = 0x8000, scoped, tag = 'input window, operand 1, single buffered']
    #allocation6 [shape = 's32[1]{0}', space=sflag, size = 0x4, scoped, tag = 'scoped memory for tpu_custom_call.1']
    #allocation7 [shape = 'u8[32768]{0}', space=vmem, size = 0x8000, scoped, tag = 'input window, operand 3, single buffered']
    #allocation8 [shape = 'u8[8192]{0}', space=vmem, size = 0x2000, scoped, tag = 'output window, operand 0, single buffered']
    %9 = vsyncpa [#allocation3], 0
    %10 = vsyncpa [#allocation6], 0
    %11 = vsyncpa [#allocation4], 0
    // Predicated region
    $region2: #{tpu_custom_call.1} parent=1 // pred_check
      _
    $region3: #{tpu_custom_call.1} parent=1 // pred_check_branch
      %13 = sbr.rel (0) target = $region5
    $region4: #{tpu_custom_call.1} parent=1 // pred_region
      %s15 = ssub.s32 128, 128
      %16 = vsyncadd [#allocation3], %s15
      %s17 = sshll.u32 [#allocation2], 4
      %s18 = int_to_ptr.vmem [resolvable:$true] %s17
      %23 = dma.hbm_to_vmem [thread:$0]  %s0, 128, %s18, [#allocation3], 64, 64, 4
    $region5: #{tpu_custom_call.1} parent=1 // pred_fallthru
      _
    // Predicated region
    $region6: #{tpu_custom_call.1} parent=1 // pred_check
      _
    $region7: #{tpu_custom_call.1} parent=1 // pred_check_branch
      %25 = sbr.rel (0) target = $region9
    $region8: #{tpu_custom_call.1} parent=1 // pred_region
      %s27 = ssub.s32 1024, 1024
      %28 = vsyncadd [#allocation6], %s27
      %s29 = sshll.u32 [#allocation5], 4
      %s30 = int_to_ptr.vmem [resolvable:$true] %s29
      %35 = dma.hbm_to_vmem [thread:$0]  %s1, 1024, %s30, [#allocation6], 64, 64, 4
    $region9: #{tpu_custom_call.1} parent=1 // pred_fallthru
      _
    // Predicated region
    $region10: #{tpu_custom_call.1} parent=1 // pred_check
      _
    $region11: #{tpu_custom_call.1} parent=1 // pred_check_branch
      %37 = sbr.rel (0) target = $region13
    $region12: #{tpu_custom_call.1} parent=1 // pred_region
      _
    $region13: #{tpu_custom_call.1} parent=1 // pred_fallthru
      _
    // Predicated region
    $region14: #{tpu_custom_call.1} parent=1 // pred_check
      _
    $region15: #{tpu_custom_call.1} parent=1 // pred_check_branch
      %39 = sbr.rel (0) target = $region17
    $region16: #{tpu_custom_call.1} parent=1 // pred_region
      %s41 = ssub.s32 1024, 1024
      %42 = vsyncadd [#allocation6], %s41
      %s43 = sshll.u32 [#allocation7], 4
      %s44 = int_to_ptr.vmem [resolvable:$true] %s43
      %49 = dma.hbm_to_vmem [thread:$0]  %s3, 1024, %s44, [#allocation6], 64, 64, 4
    $region17: #{tpu_custom_call.1} parent=1 // pred_fallthru
      _
    // Predicated region
    $region18: #{tpu_custom_call.1} parent=1 // pred_check
      _
    $region19: #{tpu_custom_call.1} parent=1 // pred_check_branch
      %51 = sbr.rel (0) target = $region21
    $region20: #{tpu_custom_call.1} parent=1 // pred_region
      %52 = dma.done [#allocation3], 128
    $region21: #{tpu_custom_call.1} parent=1 // pred_fallthru
      _
    // Predicated region
    $region22: #{tpu_custom_call.1} parent=1 // pred_check
      _
    $region23: #{tpu_custom_call.1} parent=1 // pred_check_branch
      %54 = sbr.rel (0) target = $region25
    $region24: #{tpu_custom_call.1} parent=1 // pred_region
      %55 = dma.done [#allocation6], 1024
    $region25: #{tpu_custom_call.1} parent=1 // pred_fallthru
      _
    // Predicated region
    $region26: #{tpu_custom_call.1} parent=1 // pred_check
      _
    $region27: #{tpu_custom_call.1} parent=1 // pred_check_branch
      %57 = sbr.rel (0) target = $region29
    $region28: #{tpu_custom_call.1} parent=1 // pred_region
      %58 = dma.done [#allocation6], 1024
    $region29: #{tpu_custom_call.1} parent=1 // pred_fallthru
      _
    %v60 = vld [vmem:[#allocation2] sm:$0xf]
    %v61 = vld [vmem:[#allocation2 + $0x4] sm:$0xf]
    %v62 = vld [vmem:[#allocation5] sm:$0xf]
    %v63 = vld [vmem:[#allocation5 + $0x4] sm:$0xf]
    %v64 = vld [vmem:[#allocation5 + $0x8] sm:$0xf]
    %v65 = vld [vmem:[#allocation5 + $0xc] sm:$0xf]
    %v66 = vld [vmem:[#allocation5 + $0x10] sm:$0xf]
    %v67 = vld [vmem:[#allocation5 + $0x14] sm:$0xf]
    %v68 = vld [vmem:[#allocation5 + $0x18] sm:$0xf]
    %v69 = vld [vmem:[#allocation5 + $0x1c] sm:$0xf]
    %v70 = vld [vmem:[#allocation5 + $0x20] sm:$0xf]
    %v71 = vld [vmem:[#allocation5 + $0x24] sm:$0xf]
    %v72 = vld [vmem:[#allocation5 + $0x28] sm:$0xf]
    %v73 = vld [vmem:[#allocation5 + $0x2c] sm:$0xf]
    %v74 = vld [vmem:[#allocation5 + $0x30] sm:$0xf]
    %v75 = vld [vmem:[#allocation5 + $0x34] sm:$0xf]
    %v76 = vld [vmem:[#allocation5 + $0x38] sm:$0xf]
    %v77 = vld [vmem:[#allocation5 + $0x3c] sm:$0xf]
    %v78 = vld [vmem:[%s2] sm:$0x1]
    %v80 = vlaneseq
    %v81 = vshrl.u32 %v80, 7
    %v82 = vsub.s32 0, %v81
    %v83 = vrot.slane %v78, %v82
    %v87 = vunpack.c.l.b16 %v60
    %v88 = vunpack.c.l.b16 %v61
    %v89 = vpack.c.b16 %v88, %v87
    %v107 = vunpack.c.l.b16 %v62
    %v108 = vunpack.c.l.b16 %v63
    %v109 = vunpack.c.l.b16 %v64
    %v110 = vunpack.c.l.b16 %v65
    %v111 = vunpack.c.l.b16 %v66
    %v112 = vunpack.c.l.b16 %v67
    %v113 = vunpack.c.l.b16 %v68
    %v114 = vunpack.c.l.b16 %v69
    %v115 = vunpack.c.l.b16 %v70
    %v116 = vunpack.c.l.b16 %v71
    %v117 = vunpack.c.l.b16 %v72
    %v118 = vunpack.c.l.b16 %v73
    %v119 = vunpack.c.l.b16 %v74
    %v120 = vunpack.c.l.b16 %v75
    %v121 = vunpack.c.l.b16 %v76
    %v122 = vunpack.c.l.b16 %v77
    %v123 = vpack.c.b16 %v108, %v107
    %v124 = vpack.c.b16 %v110, %v109
    %v125 = vpack.c.b16 %v112, %v111
    %v126 = vpack.c.b16 %v114, %v113
    %v127 = vpack.c.b16 %v116, %v115
    %v128 = vpack.c.b16 %v118, %v117
    %v129 = vpack.c.b16 %v120, %v119
    %v130 = vpack.c.b16 %v122, %v121
    %139 = vmatprep.subr.bf16.mxu0 0
    %140 = vmatpush1.bf16.msra.mxu0 %v130
    %141 = vmatprep.subr.bf16.mxu0 0
    %142 = vmatpush1.bf16.msra.mxu0 %v129
    %143 = vmatprep.subr.bf16.mxu0 0
    %144 = vmatpush1.bf16.msra.mxu0 %v128
    %145 = vmatprep.subr.bf16.mxu0 0
    %146 = vmatpush1.bf16.msra.mxu0 %v127
    %147 = vmatprep.subr.bf16.mxu0 0
    %148 = vmatpush1.bf16.msra.mxu0 %v126
    %149 = vmatprep.subr.bf16.mxu0 0
    %150 = vmatpush1.bf16.msra.mxu0 %v125
    %151 = vmatprep.subr.bf16.mxu0 0
    %152 = vmatpush1.bf16.msra.mxu0 %v124
    %153 = vmatprep.subr.bf16.mxu0 0
    %154 = vmatpush1.bf16.msra.mxu0 %v123
    %155 = vmatprep.subr.bf16.mxu0 0
    %156 = vmatpush2.bf16.msra.mxu0 0
    %157 = vmatprep.subr.bf16.mxu0 0
    %158 = vmatpush2.bf16.msra.mxu0 0
    %159 = vmatprep.subr.bf16.mxu0 0
    %160 = vmatpush2.bf16.msra.mxu0 0
    %161 = vmatprep.subr.bf16.mxu0 0
    %162 = vmatpush2.bf16.msra.mxu0 0
    %163 = vmatprep.subr.bf16.mxu0 0
    %164 = vmatpush2.bf16.msra.mxu0 0
    %165 = vmatprep.subr.bf16.mxu0 0
    %166 = vmatpush2.bf16.msra.mxu0 0
    %167 = vmatprep.subr.bf16.mxu0 0
    %168 = vmatpush2.bf16.msra.mxu0 0
    %169 = vmatprep.subr.bf16.mxu0 0
    %170 = vmatpush2.bf16.msra.mxu0 0
    %171 = vmatprep.mubr.bf16.mxu0 0
    %172 = vmatmul.mubr.bf16.gmra.mxu0 %v89
    %v173 = vpop.f32.mrf.mxu0
    %v174 = vadd.f32 %v83, %v173
    %v175 = vpop.f32.mrf.mxu0
    %v176 = vpop.f32.mrf.mxu0
    %v177 = vadd.f32 %v83, %v176
    %v178 = vpop.f32.mrf.mxu0
    %179 = vdwg.mxu0
    %v180 = vmul.f32 %v174, %v174
    %v181 = vmul.f32 %v177, %v177
    %v182 = vmul.f32 %v174, %v180
    %v183 = vmul.f32 %v177, %v181
    %v184 = vmul.f32 %v182, 0.044715
    %v185 = vmul.f32 %v183, 0.044715
    %v186 = vadd.f32 %v174, %v184
    %v187 = vadd.f32 %v177, %v185
    %v188 = vmul.f32 %v186, 0.7978846
    %v189 = vmul.f32 %v187, 0.7978846
    %v190 = vtanh.pop %v188
    %v191 = vtanh.pop %v189
    %v192 = vadd.f32 %v190, 1.0
    %v193 = vadd.f32 %v191, 1.0
    %v194 = vmul.f32 %v192, 0.5
    %v195 = vmul.f32 %v193, 0.5
    %v196 = vmul.f32 %v174, %v194
    %v197 = vmul.f32 %v177, %v195
    %v198 = vpack.c.bf16 %v197, %v196
    %v199 = vld [vmem:[#allocation7] sm:$0xf]
    %v200 = vld [vmem:[#allocation7 + $0x4] sm:$0xf]
    %v201 = vld [vmem:[#allocation7 + $0x8] sm:$0xf]
    %v202 = vld [vmem:[#allocation7 + $0xc] sm:$0xf]
    %v203 = vld [vmem:[#allocation7 + $0x10] sm:$0xf]
    %v204 = vld [vmem:[#allocation7 + $0x14] sm:$0xf]
    %v205 = vld [vmem:[#allocation7 + $0x18] sm:$0xf]
    %v206 = vld [vmem:[#allocation7 + $0x1c] sm:$0xf]
    %v207 = vld [vmem:[#allocation7 + $0x20] sm:$0xf]
    %v208 = vld [vmem:[#allocation7 + $0x24] sm:$0xf]
    %v209 = vld [vmem:[#allocation7 + $0x28] sm:$0xf]
    %v210 = vld [vmem:[#allocation7 + $0x2c] sm:$0xf]
    %v211 = vld [vmem:[#allocation7 + $0x30] sm:$0xf]
    %v212 = vld [vmem:[#allocation7 + $0x34] sm:$0xf]
    %v213 = vld [vmem:[#allocation7 + $0x38] sm:$0xf]
    %v214 = vld [vmem:[#allocation7 + $0x3c] sm:$0xf]
    %v231 = vunpack.c.l.b16 %v199
    %v232 = vunpack.c.l.b16 %v200
    %v233 = vunpack.c.l.b16 %v201
    %v234 = vunpack.c.l.b16 %v202
    %v235 = vunpack.c.l.b16 %v203
    %v236 = vunpack.c.l.b16 %v204
    %v237 = vunpack.c.l.b16 %v205
    %v238 = vunpack.c.l.b16 %v206
    %v239 = vunpack.c.l.b16 %v207
    %v240 = vunpack.c.l.b16 %v208
    %v241 = vunpack.c.l.b16 %v209
    %v242 = vunpack.c.l.b16 %v210
    %v243 = vunpack.c.l.b16 %v211
    %v244 = vunpack.c.l.b16 %v212
    %v245 = vunpack.c.l.b16 %v213
    %v246 = vunpack.c.l.b16 %v214
    %v247 = vpack.c.b16 %v232, %v231
    %v248 = vpack.c.b16 %v234, %v233
    %v249 = vpack.c.b16 %v236, %v235
    %v250 = vpack.c.b16 %v238, %v237
    %v251 = vpack.c.b16 %v240, %v239
    %v252 = vpack.c.b16 %v242, %v241
    %v253 = vpack.c.b16 %v244, %v243
    %v254 = vpack.c.b16 %v246, %v245
    %263 = vmatprep.subr.bf16.mxu0 0
    %264 = vmatpush1.bf16.msra.mxu0 %v254
    %265 = vmatprep.subr.bf16.mxu0 0
    %266 = vmatpush1.bf16.msra.mxu0 %v253
    %267 = vmatprep.subr.bf16.mxu0 0
    %268 = vmatpush1.bf16.msra.mxu0 %v252
    %269 = vmatprep.subr.bf16.mxu0 0
    %270 = vmatpush1.bf16.msra.mxu0 %v251
    %271 = vmatprep.subr.bf16.mxu0 0
    %272 = vmatpush1.bf16.msra.mxu0 %v250
    %273 = vmatprep.subr.bf16.mxu0 0
    %274 = vmatpush1.bf16.msra.mxu0 %v249
    %275 = vmatprep.subr.bf16.mxu0 0
    %276 = vmatpush1.bf16.msra.mxu0 %v248
    %277 = vmatprep.subr.bf16.mxu0 0
    %278 = vmatpush1.bf16.msra.mxu0 %v247
    %279 = vmatprep.subr.bf16.mxu0 0
    %280 = vmatpush2.bf16.msra.mxu0 0
    %281 = vmatprep.subr.bf16.mxu0 0
    %282 = vmatpush2.bf16.msra.mxu0 0
    %283 = vmatprep.subr.bf16.mxu0 0
    %284 = vmatpush2.bf16.msra.mxu0 0
    %285 = vmatprep.subr.bf16.mxu0 0
    %286 = vmatpush2.bf16.msra.mxu0 0
    %287 = vmatprep.subr.bf16.mxu0 0
    %288 = vmatpush2.bf16.msra.mxu0 0
    %289 = vmatprep.subr.bf16.mxu0 0
    %290 = vmatpush2.bf16.msra.mxu0 0
    %291 = vmatprep.subr.bf16.mxu0 0
    %292 = vmatpush2.bf16.msra.mxu0 0
    %293 = vmatprep.subr.bf16.mxu0 0
    %294 = vmatpush2.bf16.msra.mxu0 0
    %295 = vmatprep.mubr.bf16.mxu0 0
    %296 = vmatmul.mubr.bf16.gmra.mxu0 %v198
    %v297 = vpop.f32.mrf.mxu0
    %v298 = vadd.f32 0.0, %v297
    %v299 = vpop.f32.mrf.mxu0
    %v300 = vpop.f32.mrf.mxu0
    %v301 = vadd.f32 0.0, %v300
    %v302 = vpop.f32.mrf.mxu0
    %303 = vdwg.mxu0
    %304 = vst [vmem:[#allocation8] sm:$0xff] %v298
    %305 = vst [vmem:[#allocation8 + $0x8] sm:$0xff] %v301
    // Predicated region
    $region30: #{tpu_custom_call.1} parent=1 // pred_check
      _
    $region31: #{tpu_custom_call.1} parent=1 // pred_check_branch
      %307 = sbr.rel (0) target = $region33
    $region32: #{tpu_custom_call.1} parent=1 // pred_region
      %s309 = ssub.s32 256, 256
      %310 = vsyncadd [#allocation4], %s309
      %s311 = sshll.u32 [#allocation8], 4
      %s312 = int_to_ptr.vmem [resolvable:$true] %s311
      %317 = dma.vmem_to_hbm [thread:$0]  %s312, 256, %s4, [#allocation4], 128, 128, 8
    $region33: #{tpu_custom_call.1} parent=1 // pred_fallthru
      _
    // Predicated region
    $region34: #{tpu_custom_call.1} parent=1 // pred_check
      _
    $region35: #{tpu_custom_call.1} parent=1 // pred_check_branch
      %319 = sbr.rel (0) target = $region37
    $region36: #{tpu_custom_call.1} parent=1 // pred_region
      %320 = dma.done [#allocation4], 256
    $region37: #{tpu_custom_call.1} parent=1 // pred_fallthru
      _
    %321 = vsyncpa [#allocation3], 1
    %322 = vsyncpa [#allocation6], 1
    %323 = vsyncpa [#allocation4], 1

</llo_original>
